<compile_context>
chip_gen: v7x
topology: tpu7x:2x2x1
jax: 0.10.0
libtpu: 0.0.40
codegen_flags: <defaults>
</compile_context>

<pallas_src>
import functools

import jax
import jax.numpy as jnp
from jax.experimental import pallas as pl
from jax.experimental.pallas import tpu as pltpu


def atten_kernel(x_ref, wl_ref, wh_ref, o_ref, *, pad: int):
    """Concat(x, x) along length, 'same' 1-D conv (K = 2*pad+1), sigmoid.

    x_ref  : (TB, L)   VMEM tile of the input
    wl_ref : (K, L)    VMEM banded weights for output columns [0, L)
    wh_ref : (K, L)    VMEM banded weights for output columns [L, 2L)
    o_ref  : (TB, 2L)  VMEM tile of the output
    """
    x = x_ref[...].astype(jnp.float32)                # (TB, L), f32 accumulate
    _, L = x.shape
    K = 2 * pad + 1

    wl = wl_ref[...]                                  # (K, L), loaded once
    wh = wh_ref[...]

    # Circular conv per half; the 'same'-conv zero padding is already encoded
    # in the banded weights (zeroed at the boundary lanes), so no cmp/select.
    #   out_lo[:, i] = sum_k wl[k, i] * x[:, (i + k - pad) mod L]
    #   out_hi[:, j] = sum_k wh[k, j] * x[:, (j + k - pad) mod L]
    acc_lo = wl[pad:pad + 1, :] * x                   # center tap (d = 0)
    acc_hi = wh[pad:pad + 1, :] * x
    for k in range(K):                                # small & static -> unrolled
        d = k - pad
        if d == 0:
            continue
        rolled = pltpu.roll(x, shift=(-d) % L, axis=1)   # XLU slot, ~free
        acc_lo = acc_lo + wl[k:k + 1, :] * rolled
        acc_hi = acc_hi + wh[k:k + 1, :] * rolled

    # Two lane-aligned half-writes (lane-dense unmasked vst when L % 128 == 0).
    o_ref[:, :L] = jax.nn.sigmoid(acc_lo).astype(o_ref.dtype)
    o_ref[:, L:] = jax.nn.sigmoid(acc_hi).astype(o_ref.dtype)


def _banded_weights(conv_w: jax.Array, pad: int, L: int):
    """Per-lane conv weights with the 'same'-padding zeros baked in.

    w_lo[k, i] = conv_w[k] if i + (k - pad) >= 0 else 0   (first output half)
    w_hi[k, j] = conv_w[k] if j + (k - pad) <  L else 0   (second output half)
    """
    K = conv_w.shape[0]
    d = (jnp.arange(K) - pad)[:, None]                 # (K, 1)
    i = jnp.arange(L)[None, :]                         # (1, L)
    w = conv_w.astype(jnp.float32)[:, None]            # (K, 1)
    w_lo = jnp.where(i + d >= 0, w, 0.0)
    w_hi = jnp.where(i + d < L, w, 0.0)
    return w_lo, w_hi


def _round_up(n: int, m: int) -> int:
    return ((n + m - 1) // m) * m


def _pick_vmem_limit_bytes() -> int:
    """Request ~half of physical VMEM (64 MiB on v5e/v6e, 32 MiB on v7x)."""
    try:
        cap = int(pltpu.get_tpu_info().vmem_capacity_bytes)
    except Exception:
        cap = 64 * 1024 * 1024                         # conservative fallback
    return max(32 * 1024 * 1024, min(cap // 2, 100 * 1024 * 1024))


def _choose_batch_tile(B: int, L: int, vmem_limit_bytes: int,
                       max_tile: int = 2048) -> int:
    """Biggest batch tile whose double-buffered working set fits ~half the
    requested VMEM limit (generation-aware via the queried capacity)."""
    # Per batch-row f32 bytes: double-buffered input (L) + output (2L) blocks
    # plus ~6 full-width live temporaries inside the kernel.
    per_row = 4 * (2 * L + 2 * (2 * L) + 6 * L)        # = 48 * L bytes
    budget = vmem_limit_bytes // 2                     # headroom for weights etc.
    tb = budget // max(per_row, 1)
    tb = min(tb, max_tile)
    tb = min(tb, _round_up(B, 8))                      # no point exceeding batch
    tb = max(tb, 8)
    return (tb // 8) * 8                               # sublane multiple


def atten_forward(x: jax.Array, conv_w: jax.Array, pad: int = 3,
                  block_b: int | None = None) -> jax.Array:
    """x: (B, L) float32, conv_w: (K,) float32 with K = 2*pad + 1."""
    B, L = x.shape
    K = conv_w.shape[0]
    assert K == 2 * pad + 1
    assert pad < L, "padding must be smaller than the sequence length"

    vmem_limit = _pick_vmem_limit_bytes()
    TB = block_b if block_b is not None else _choose_batch_tile(B, L, vmem_limit)
    TB = max(8, (TB // 8) * 8)

    w_lo, w_hi = _banded_weights(conv_w, pad, L)       # tiny (K, L) each

    # Ragged last block handled by Pallas (rows are independent) -> no host
    # jnp.pad / output slice copies.
    grid = (pl.cdiv(B, TB),)

    out = pl.pallas_call(
        functools.partial(atten_kernel, pad=pad),
        out_shape=jax.ShapeDtypeStruct((B, 2 * L), x.dtype),
        grid=grid,
        in_specs=[
            pl.BlockSpec((TB, L), lambda i: (i, 0)),       # x tile
            pl.BlockSpec((K, L), lambda i: (0, 0)),        # banded weights (lo), resident
            pl.BlockSpec((K, L), lambda i: (0, 0)),        # banded weights (hi), resident
        ],
        out_specs=pl.BlockSpec((TB, 2 * L), lambda i: (i, 0)),
        compiler_params=pltpu.CompilerParams(
            dimension_semantics=("parallel",),             # megacore sharding
            vmem_limit_bytes=vmem_limit,
        ),
    )(x, w_lo, w_hi)

    return out


def _reference(x, conv_w, pad=3):
    """Pure-JAX reference of the PyTorch forward (eval mode, bias=False)."""
    xt = jnp.concatenate([x, x], axis=-1)                            # (B, 2L)
    xp = jnp.pad(xt, ((0, 0), (pad, pad)))
    K = conv_w.shape[0]
    L2 = xt.shape[1]
    out = sum(conv_w[k] * xp[:, k:k + L2] for k in range(K))
    return jax.nn.sigmoid(out)


if __name__ == "__main__":
    key = jax.random.PRNGKey(0)
    kx, kw = jax.random.split(key)

    B, L, PADDING = 16, 128, 3      # 2L = 256 -> lane-dense output stores
    K = 2 * PADDING + 1

    # Input features (small, deterministic).
    x = jax.random.normal(kx, (B, L), dtype=jnp.float32)

    # Conv1d(1, 1, K, bias=False) weight, PyTorch-style uniform init
    # U(-1/sqrt(in_ch*K), 1/sqrt(in_ch*K)), deterministic from PRNGKey(0).
    bound = 1.0 / jnp.sqrt(jnp.float32(1 * K))
    conv_w = jax.random.uniform(kw, (K,), dtype=jnp.float32,
                                minval=-bound, maxval=bound)

    # block_b=8 -> 2 grid steps, exercising the batch-tiled pipeline.
    out = atten_forward(x, conv_w, pad=PADDING, block_b=8)
    out = jax.block_until_ready(out)

    ref = _reference(x, conv_w, pad=PADDING)
    assert out.shape == (B, 2 * L), out.shape
    assert jnp.allclose(out, ref, atol=1e-5, rtol=1e-5), "mismatch vs reference"

    # Also exercise the auto-sized tile + ragged (B % TB != 0) path once.
    out2 = jax.block_until_ready(atten_forward(x[:13], conv_w, pad=PADDING))
    assert jnp.allclose(out2, ref[:13], atol=1e-5, rtol=1e-5), "ragged mismatch"

    print("KERNEL_OK")
</pallas_src>

<mosaic_0001>
module attributes {stable_mosaic.version = 11 : i64} {
  func.func @atten_kernel(%arg0: i32, %arg1: memref<8x128xf32, #tpu.memory_space<vmem>>, %arg2: memref<7x128xf32, #tpu.memory_space<vmem>>, %arg3: memref<7x128xf32, #tpu.memory_space<vmem>>, %arg4: memref<8x256xf32, #tpu.memory_space<vmem>>) attributes {dimension_semantics = [#tpu.dimension_semantics<parallel>], iteration_bounds = array<i64: 2>, scalar_prefetch = 0 : i64, scratch_operands = 0 : i64, tpu.core_type = #tpu.core_type<tc>, window_params = [{transform_indices = @transform_0, window_bounds = array<i64: 8, 128>}, {pipeline_mode = #tpu.pipeline_mode<synchronous>, transform_indices = @transform_1, window_bounds = array<i64: 7, 128>}, {pipeline_mode = #tpu.pipeline_mode<synchronous>, transform_indices = @transform_2, window_bounds = array<i64: 7, 128>}, {transform_indices = @transform_3, window_bounds = array<i64: 8, 256>}]} {
    %c0 = arith.constant 0 : index
    %c0_0 = arith.constant 0 : index
    %0 = vector.load %arg1[%c0, %c0_0] : memref<8x128xf32, #tpu.memory_space<vmem>>, vector<8x128xf32>
    %c0_1 = arith.constant 0 : index
    %c0_2 = arith.constant 0 : index
    %1 = vector.load %arg2[%c0_1, %c0_2] : memref<7x128xf32, #tpu.memory_space<vmem>>, vector<7x128xf32>
    %c0_3 = arith.constant 0 : index
    %c0_4 = arith.constant 0 : index
    %2 = vector.load %arg3[%c0_3, %c0_4] : memref<7x128xf32, #tpu.memory_space<vmem>>, vector<7x128xf32>
    %3 = vector.extract_strided_slice %1 {offsets = [3, 0], sizes = [1, 128], strides = [1, 1]} : vector<7x128xf32> to vector<1x128xf32>
    %4 = vector.broadcast %3 : vector<1x128xf32> to vector<8x128xf32>
    %5 = arith.mulf %4, %0 : vector<8x128xf32>
    %6 = vector.extract_strided_slice %2 {offsets = [3, 0], sizes = [1, 128], strides = [1, 1]} : vector<7x128xf32> to vector<1x128xf32>
    %7 = vector.broadcast %6 : vector<1x128xf32> to vector<8x128xf32>
    %8 = arith.mulf %7, %0 : vector<8x128xf32>
    %c3_i32 = arith.constant 3 : i32
    %9 = tpu.dynamic_rotate %0 by %c3_i32 dim 1 : vector<8x128xf32>, i32 -> vector<8x128xf32>
    %10 = vector.extract_strided_slice %1 {offsets = [0, 0], sizes = [1, 128], strides = [1, 1]} : vector<7x128xf32> to vector<1x128xf32>
    %11 = vector.broadcast %10 : vector<1x128xf32> to vector<8x128xf32>
    %12 = arith.mulf %11, %9 : vector<8x128xf32>
    %13 = arith.addf %5, %12 : vector<8x128xf32>
    %14 = vector.extract_strided_slice %2 {offsets = [0, 0], sizes = [1, 128], strides = [1, 1]} : vector<7x128xf32> to vector<1x128xf32>
    %15 = vector.broadcast %14 : vector<1x128xf32> to vector<8x128xf32>
    %16 = arith.mulf %15, %9 : vector<8x128xf32>
    %17 = arith.addf %8, %16 : vector<8x128xf32>
    %c2_i32 = arith.constant 2 : i32
    %18 = tpu.dynamic_rotate %0 by %c2_i32 dim 1 : vector<8x128xf32>, i32 -> vector<8x128xf32>
    %19 = vector.extract_strided_slice %1 {offsets = [1, 0], sizes = [1, 128], strides = [1, 1]} : vector<7x128xf32> to vector<1x128xf32>
    %20 = vector.broadcast %19 : vector<1x128xf32> to vector<8x128xf32>
    %21 = arith.mulf %20, %18 : vector<8x128xf32>
    %22 = arith.addf %13, %21 : vector<8x128xf32>
    %23 = vector.extract_strided_slice %2 {offsets = [1, 0], sizes = [1, 128], strides = [1, 1]} : vector<7x128xf32> to vector<1x128xf32>
    %24 = vector.broadcast %23 : vector<1x128xf32> to vector<8x128xf32>
    %25 = arith.mulf %24, %18 : vector<8x128xf32>
    %26 = arith.addf %17, %25 : vector<8x128xf32>
    %c1_i32 = arith.constant 1 : i32
    %27 = tpu.dynamic_rotate %0 by %c1_i32 dim 1 : vector<8x128xf32>, i32 -> vector<8x128xf32>
    %28 = vector.extract_strided_slice %1 {offsets = [2, 0], sizes = [1, 128], strides = [1, 1]} : vector<7x128xf32> to vector<1x128xf32>
    %29 = vector.broadcast %28 : vector<1x128xf32> to vector<8x128xf32>
    %30 = arith.mulf %29, %27 : vector<8x128xf32>
    %31 = arith.addf %22, %30 : vector<8x128xf32>
    %32 = vector.extract_strided_slice %2 {offsets = [2, 0], sizes = [1, 128], strides = [1, 1]} : vector<7x128xf32> to vector<1x128xf32>
    %33 = vector.broadcast %32 : vector<1x128xf32> to vector<8x128xf32>
    %34 = arith.mulf %33, %27 : vector<8x128xf32>
    %35 = arith.addf %26, %34 : vector<8x128xf32>
    %c127_i32 = arith.constant 127 : i32
    %36 = tpu.dynamic_rotate %0 by %c127_i32 dim 1 : vector<8x128xf32>, i32 -> vector<8x128xf32>
    %37 = vector.extract_strided_slice %1 {offsets = [4, 0], sizes = [1, 128], strides = [1, 1]} : vector<7x128xf32> to vector<1x128xf32>
    %38 = vector.broadcast %37 : vector<1x128xf32> to vector<8x128xf32>
    %39 = arith.mulf %38, %36 : vector<8x128xf32>
    %40 = arith.addf %31, %39 : vector<8x128xf32>
    %41 = vector.extract_strided_slice %2 {offsets = [4, 0], sizes = [1, 128], strides = [1, 1]} : vector<7x128xf32> to vector<1x128xf32>
    %42 = vector.broadcast %41 : vector<1x128xf32> to vector<8x128xf32>
    %43 = arith.mulf %42, %36 : vector<8x128xf32>
    %44 = arith.addf %35, %43 : vector<8x128xf32>
    %c126_i32 = arith.constant 126 : i32
    %45 = tpu.dynamic_rotate %0 by %c126_i32 dim 1 : vector<8x128xf32>, i32 -> vector<8x128xf32>
    %46 = vector.extract_strided_slice %1 {offsets = [5, 0], sizes = [1, 128], strides = [1, 1]} : vector<7x128xf32> to vector<1x128xf32>
    %47 = vector.broadcast %46 : vector<1x128xf32> to vector<8x128xf32>
    %48 = arith.mulf %47, %45 : vector<8x128xf32>
    %49 = arith.addf %40, %48 : vector<8x128xf32>
    %50 = vector.extract_strided_slice %2 {offsets = [5, 0], sizes = [1, 128], strides = [1, 1]} : vector<7x128xf32> to vector<1x128xf32>
    %51 = vector.broadcast %50 : vector<1x128xf32> to vector<8x128xf32>
    %52 = arith.mulf %51, %45 : vector<8x128xf32>
    %53 = arith.addf %44, %52 : vector<8x128xf32>
    %c125_i32 = arith.constant 125 : i32
    %54 = tpu.dynamic_rotate %0 by %c125_i32 dim 1 : vector<8x128xf32>, i32 -> vector<8x128xf32>
    %55 = vector.extract_strided_slice %1 {offsets = [6, 0], sizes = [1, 128], strides = [1, 1]} : vector<7x128xf32> to vector<1x128xf32>
    %56 = vector.broadcast %55 : vector<1x128xf32> to vector<8x128xf32>
    %57 = arith.mulf %56, %54 : vector<8x128xf32>
    %58 = arith.addf %49, %57 : vector<8x128xf32>
    %59 = vector.extract_strided_slice %2 {offsets = [6, 0], sizes = [1, 128], strides = [1, 1]} : vector<7x128xf32> to vector<1x128xf32>
    %60 = vector.broadcast %59 : vector<1x128xf32> to vector<8x128xf32>
    %61 = arith.mulf %60, %54 : vector<8x128xf32>
    %62 = arith.addf %53, %61 : vector<8x128xf32>
    %63 = arith.negf %58 : vector<8x128xf32>
    %64 = math.exp %63 : vector<8x128xf32>
    %cst = arith.constant 1.000000e+00 : f32
    %65 = vector.broadcast %cst : f32 to vector<8x128xf32>
    %66 = arith.addf %65, %64 : vector<8x128xf32>
    %67 = arith.divf %65, %66 : vector<8x128xf32>
    %c0_5 = arith.constant 0 : index
    %c0_6 = arith.constant 0 : index
    %68 = vector.load %arg4[%c0_5, %c0_6] : memref<8x256xf32, #tpu.memory_space<vmem>>, vector<8x128xf32>
    tpu.vector_store %arg4[%c0_5, %c0_6], %67 {strides = array<i32>} : memref<8x256xf32, #tpu.memory_space<vmem>>, vector<8x128xf32>,
    %69 = arith.negf %62 : vector<8x128xf32>
    %70 = math.exp %69 : vector<8x128xf32>
    %cst_7 = arith.constant 1.000000e+00 : f32
    %71 = vector.broadcast %cst_7 : f32 to vector<8x128xf32>
    %72 = arith.addf %71, %70 : vector<8x128xf32>
    %73 = arith.divf %71, %72 : vector<8x128xf32>
    %c0_8 = arith.constant 0 : index
    %c128 = arith.constant 128 : index
    %74 = vector.load %arg4[%c0_8, %c128] : memref<8x256xf32, #tpu.memory_space<vmem>>, vector<8x128xf32>
    tpu.vector_store %arg4[%c0_8, %c128], %73 {strides = array<i32>} : memref<8x256xf32, #tpu.memory_space<vmem>>, vector<8x128xf32>,
    return
  }
  func.func @transform_0(%arg0: i32) -> (i32, i32) {
    %c0_i32 = arith.constant 0 : i32
    %c0_i32_0 = arith.constant 0 : i32
    return %arg0, %c0_i32 : i32, i32
  }
  func.func @transform_1(%arg0: i32) -> (i32, i32) {
    %c0_i32 = arith.constant 0 : i32
    %c0_i32_0 = arith.constant 0 : i32
    %c0_i32_1 = arith.constant 0 : i32
    return %c0_i32, %c0_i32_0 : i32, i32
  }
  func.func @transform_2(%arg0: i32) -> (i32, i32) {
    %c0_i32 = arith.constant 0 : i32
    %c0_i32_0 = arith.constant 0 : i32
    %c0_i32_1 = arith.constant 0 : i32
    return %c0_i32, %c0_i32_0 : i32, i32
  }
  func.func @transform_3(%arg0: i32) -> (i32, i32) {
    %c0_i32 = arith.constant 0 : i32
    %c0_i32_0 = arith.constant 0 : i32
    return %arg0, %c0_i32 : i32, i32
  }
}

</mosaic_0001>

<llo_original>
// kernel: tpu_custom_call.1
$region0: #{tpu_custom_call.1}
  #allocation0 [shape = 'u32[]', space=smem, size = 0x4, offset = 0x4, fixed_abs, tag = 'smem constant byte address 0x4 - core index']
  #allocation1 [shape = 'u32[144,128]{1,0:T(1,128)}', space=vmem, size = 0x12000, scoped, tag = 'internal scratch']
  %s0 = inlined_call_operand.hbm [shape: f32[16,128], index: 0, kind: input, shape index: {}]
  %s1 = inlined_call_operand.hbm [shape: f32[7,128], index: 1, kind: input, shape index: {}]
  %s2 = inlined_call_operand.hbm [shape: f32[7,128], index: 2, kind: input, shape index: {}]
  %s3 = inlined_call_operand.hbm [shape: f32[16,256], index: 3, kind: output, shape index: {}]
  %s4 = sld [smem:[#allocation0]]
  $region57: #{tpu_custom_call.1} parent=0
    _
  %s6 = ssub.s32 1, %s4
  %s7 = scalar_select 0, %s6, %s4
  $region1: #{tpu_custom_call.1} parent=0
    #allocation2 [shape = 'u8[8192]{0}', space=vmem, size = 0x2000, scoped, tag = 'input window, operand 0']
    #allocation3 [shape = 's32[2]{0}', space=sflag, size = 0x8, scoped, tag = 'scoped memory for tpu_custom_call.1']
    #allocation4 [shape = 's32[2]{0}', space=sflag, size = 0x8, scoped, tag = 'scoped memory for tpu_custom_call.1']
    #allocation5 [shape = 'u8[4096]{0}', space=vmem, size = 0x1000, scoped, tag = 'input window, operand 1, single buffered']
    #allocation6 [shape = 's32[1]{0}', space=sflag, size = 0x4, scoped, tag = 'scoped memory for tpu_custom_call.1']
    #allocation7 [shape = 'u8[4096]{0}', space=vmem, size = 0x1000, scoped, tag = 'input window, operand 2, single buffered']
    #allocation8 [shape = 'u8[16384]{0}', space=vmem, size = 0x4000, scoped, tag = 'output window, operand 0']
    %8 = vsyncpa [#allocation3], 0
    %s9 = scalar_lea.sflag [#allocation3], 1
    %10 = vsyncpa %s9, 0
    %11 = vsyncpa [#allocation6], 0
    %12 = vsyncpa [#allocation4], 0
    %s13 = scalar_lea.sflag [#allocation4], 1
    %14 = vsyncpa %s13, 0
    loop: start=0, step=1, limit=4
    $region2: #{tpu_custom_call.1} parent=1 // loop_pre_header
      _
    $region3: #{tpu_custom_call.1} parent=1 // loop_header
      %s16 = sphi 0, %s20
      %p17 = scmp.ge.s32.totalorder %s16, 4
      %s26 = sphi 0, %s28
      %s29 = sphi 0, %s26
      %s30 = sphi 0, %s29
      %s46 = sphi 0, %s30
      %s50 = sphi 0, %s50
      %s52 = sphi 0, %s50
      %s53 = sphi 0, %s52
      %s67 = sphi 0, %s53
      %s71 = sphi 0, %s71
      %s73 = sphi 0, %s71
      %s74 = sphi 0, %s73
      %s88 = sphi 0, %s74
      %s94 = sphi 0, %s96
      %s97 = sphi 0, %s94
      %s98 = sphi 0, %s97
      %s114 = sphi 0, %s98
    $region4: #{tpu_custom_call.1} parent=1 // loop_header_branch
      %19 = sbr.rel (%p17) target = $region8
    $region5: #{tpu_custom_call.1} parent=1 // loop_body
      %s21 = ssub.s32 %s16, 1
      %s22 = ssub.s32 %s16, 2
      %s23 = sadd.s32 %s16, 1
      %s24 = ssub.s32 %s16, %s23
      %p25 = scmp.eq.s32.totalorder %s24, 0
      %s27 = sadd.s32 %s26, 1
      %s28 = scalar_select %p25, %s26, %s27
      %p31 = pneg %p25
      %p32 = scmp.eq.s32.totalorder %s16, 1
      %p33 = por %p31, %p32
      %p34 = scmp.ne.s32.totalorder %s26, %s29
      %p35 = scmp.eq.s32.totalorder %s16, 0
      %p36 = por %p34, %p35
      %p37 = scmp.ne.s32.totalorder %s26, %s29
      %p38 = scmp.eq.s32.totalorder %s21, 1
      %p39 = por %p37, %p38
      %p40 = scmp.ne.s32.totalorder %s29, %s30
      %p41 = scmp.eq.s32.totalorder %s21, 0
      %p42 = por %p40, %p41
      %p43 = scmp.ne.s32.totalorder %s29, %s30
      %p44 = scmp.eq.s32.totalorder %s22, 1
      %p45 = por %p43, %p44
      %p47 = scmp.ne.s32.totalorder %s30, %s46
      %p48 = scmp.eq.s32.totalorder %s22, 0
      %p49 = por %p47, %p48
      %s51 = sadd.s32 %s50, 1
      %p54 = scmp.eq.s32.totalorder %s16, 1
      %p55 = scmp.ne.s32.totalorder %s50, %s52
      %p56 = scmp.eq.s32.totalorder %s16, 0
      %p57 = por %p55, %p56
      %p58 = scmp.ne.s32.totalorder %s50, %s52
      %p59 = scmp.eq.s32.totalorder %s21, 1
      %p60 = por %p58, %p59
      %p61 = scmp.ne.s32.totalorder %s52, %s53
      %p62 = scmp.eq.s32.totalorder %s21, 0
      %p63 = por %p61, %p62
      %p64 = scmp.ne.s32.totalorder %s52, %s53
      %p65 = scmp.eq.s32.totalorder %s22, 1
      %p66 = por %p64, %p65
      %p68 = scmp.ne.s32.totalorder %s53, %s67
      %p69 = scmp.eq.s32.totalorder %s22, 0
      %p70 = por %p68, %p69
      %s72 = sadd.s32 %s71, 1
      %p75 = scmp.eq.s32.totalorder %s16, 1
      %p76 = scmp.ne.s32.totalorder %s71, %s73
      %p77 = scmp.eq.s32.totalorder %s16, 0
      %p78 = por %p76, %p77
      %p79 = scmp.ne.s32.totalorder %s71, %s73
      %p80 = scmp.eq.s32.totalorder %s21, 1
      %p81 = por %p79, %p80
      %p82 = scmp.ne.s32.totalorder %s73, %s74
      %p83 = scmp.eq.s32.totalorder %s21, 0
      %p84 = por %p82, %p83
      %p85 = scmp.ne.s32.totalorder %s73, %s74
      %p86 = scmp.eq.s32.totalorder %s22, 1
      %p87 = por %p85, %p86
      %p89 = scmp.ne.s32.totalorder %s74, %s88
      %p90 = scmp.eq.s32.totalorder %s22, 0
      %p91 = por %p89, %p90
      %s92 = ssub.s32 %s16, %s23
      %p93 = scmp.eq.s32.totalorder %s92, 0
      %s95 = sadd.s32 %s94, 1
      %s96 = scalar_select %p93, %s94, %s95
      %p99 = pneg %p93
      %p100 = scmp.eq.s32.totalorder %s16, 1
      %p101 = por %p99, %p100
      %p102 = scmp.ne.s32.totalorder %s94, %s97
      %p103 = scmp.eq.s32.totalorder %s16, 0
      %p104 = por %p102, %p103
      %p105 = scmp.ne.s32.totalorder %s94, %s97
      %p106 = scmp.eq.s32.totalorder %s21, 1
      %p107 = por %p105, %p106
      %p108 = scmp.ne.s32.totalorder %s97, %s98
      %p109 = scmp.eq.s32.totalorder %s21, 0
      %p110 = por %p108, %p109
      %p111 = scmp.ne.s32.totalorder %s97, %s98
      %p112 = scmp.eq.s32.totalorder %s22, 1
      %p113 = por %p111, %p112
      %p115 = scmp.ne.s32.totalorder %s98, %s114
      %p116 = scmp.eq.s32.totalorder %s22, 0
      %p117 = por %p115, %p116
      %p118 = scmp.le.s32.totalorder 1, %s16
      %p119 = scmp.lt.s32.totalorder %s16, 3
      %p120 = pnand %p118, %p119
      %p121 = pneg %p120
      // Predicated region
      $region9: #{tpu_custom_call.1} parent=5 // pred_check
        _
      $region10: #{tpu_custom_call.1} parent=5 // pred_check_branch
        %123 = sbr.rel (%p120) target = $region12
      $region11: #{tpu_custom_call.1} parent=5 // pred_region
        %s124 = ssub.s32 %s16, 1
        // Predicated region
        $region13: #{tpu_custom_call.1} parent=11 // pred_check
          %p125 = pneg %p63
        $region14: #{tpu_custom_call.1} parent=11 // pred_check_branch
          %127 = sbr.rel (%p125) target = $region16
        $region15: #{tpu_custom_call.1} parent=11 // pred_region
          %s129 = ssub.s32 128, 128
          %130 = vsyncadd [#allocation6], %s129
          %s132 = sshll.u32 [#allocation5], 4
          %s133 = int_to_ptr.vmem [resolvable:$true] %s132
          %135 = dma.hbm_to_vmem [thread:$0]  %s1, 128, %s133, [#allocation6]
        $region16: #{tpu_custom_call.1} parent=11 // pred_fallthru
          _
        // Predicated region
        $region17: #{tpu_custom_call.1} parent=11 // pred_check
          %p136 = pneg %p84
        $region18: #{tpu_custom_call.1} parent=11 // pred_check_branch
          %138 = sbr.rel (%p136) target = $region20
        $region19: #{tpu_custom_call.1} parent=11 // pred_region
          %s140 = ssub.s32 128, 128
          %141 = vsyncadd [#allocation6], %s140
          %s143 = sshll.u32 [#allocation7], 4
          %s144 = int_to_ptr.vmem [resolvable:$true] %s143
          %146 = dma.hbm_to_vmem [thread:$0]  %s2, 128, %s144, [#allocation6]
        $region20: #{tpu_custom_call.1} parent=11 // pred_fallthru
          _
      $region12: #{tpu_custom_call.1} parent=5 // pred_fallthru
        _
      %p147 = scmp.lt.s32.totalorder %s16, 2
      // Predicated region
      $region21: #{tpu_custom_call.1} parent=5 // pred_check
        %p148 = pneg %p147
      $region22: #{tpu_custom_call.1} parent=5 // pred_check_branch
        %150 = sbr.rel (%p148) target = $region24
      $region23: #{tpu_custom_call.1} parent=5 // pred_region
        // Predicated region
        $region25: #{tpu_custom_call.1} parent=23 // pred_check
          %p151 = pneg %p36
        $region26: #{tpu_custom_call.1} parent=23 // pred_check_branch
          %153 = sbr.rel (%p151) target = $region28
        $region27: #{tpu_custom_call.1} parent=23 // pred_region
          %s154 = sand.u32 %s26, 1
          %s155 = scalar_lea.sflag [#allocation3], %s154
          %s156 = sand.u32 %s26, 1
          %s157 = smul.addr %s156, 8
          %s158 = scalar_lea.vmem [#allocation2], %s157
          %s160 = ssub.s32 128, 128
          %161 = vsyncadd %s155, %s160
          %s162 = smul.addr %s16, 128
          %s163 = scalar_lea.hbm %s0, %s162
          %s165 = sshll.u32 %s158, 4
          %s166 = int_to_ptr.vmem [resolvable:$true] %s165
          %168 = dma.hbm_to_vmem [thread:$0]  %s163, 128, %s166, %s155
        $region28: #{tpu_custom_call.1} parent=23 // pred_fallthru
          _
      $region24: #{tpu_custom_call.1} parent=5 // pred_fallthru
        _
      %p169 = scmp.le.s32.totalorder 1, %s16
      %p170 = scmp.lt.s32.totalorder %s16, 3
      %p171 = pnand %p169, %p170
      %p172 = pneg %p171
      // Predicated region
      $region29: #{tpu_custom_call.1} parent=5 // pred_check
        _
      $region30: #{tpu_custom_call.1} parent=5 // pred_check_branch
        %174 = sbr.rel (%p171) target = $region32
      $region31: #{tpu_custom_call.1} parent=5 // pred_region
        %s175 = ssub.s32 %s16, 1
        %s176 = sand.u32 %s29, 1
        %s177 = scalar_lea.sflag [#allocation3], %s176
        %s178 = sand.u32 %s29, 1
        %s179 = smul.addr %s178, 8
        %s180 = scalar_lea.vmem [#allocation2], %s179
        // Predicated region
        $region33: #{tpu_custom_call.1} parent=31 // pred_check
          %p181 = pneg %p42
        $region34: #{tpu_custom_call.1} parent=31 // pred_check_branch
          %183 = sbr.rel (%p181) target = $region36
        $region35: #{tpu_custom_call.1} parent=31 // pred_region
          %184 = dma.done %s177, 128
        $region36: #{tpu_custom_call.1} parent=31 // pred_fallthru
          _
        // Predicated region
        $region37: #{tpu_custom_call.1} parent=31 // pred_check
          %p185 = pneg %p63
        $region38: #{tpu_custom_call.1} parent=31 // pred_check_branch
          %187 = sbr.rel (%p185) target = $region40
        $region39: #{tpu_custom_call.1} parent=31 // pred_region
          %188 = dma.done [#allocation6], 128
        $region40: #{tpu_custom_call.1} parent=31 // pred_fallthru
          _
        // Predicated region
        $region41: #{tpu_custom_call.1} parent=31 // pred_check
          %p189 = pneg %p84
        $region42: #{tpu_custom_call.1} parent=31 // pred_check_branch
          %191 = sbr.rel (%p189) target = $region44
        $region43: #{tpu_custom_call.1} parent=31 // pred_region
          %192 = dma.done [#allocation6], 128
        $region44: #{tpu_custom_call.1} parent=31 // pred_fallthru
          _
        %s193 = sand.u32 %s29, 1
        %s194 = scalar_lea.sflag [#allocation3], %s193
        %s195 = sand.u32 %s29, 1
        %s196 = smul.addr %s195, 8
        %s197 = scalar_lea.vmem [#allocation2], %s196
        %p198 = pneg %p42
        %p199 = pneg %p39
        %p200 = pneg %p63
        %p201 = pneg %p60
        %p202 = pneg %p84
        %p203 = pneg %p81
        %p204 = pneg %p110
        %p205 = pneg %p107
        %s206 = sand.u32 %s97, 1
        %s207 = scalar_lea.sflag [#allocation4], %s206
        %s208 = sand.u32 %s97, 1
        %s209 = smul.addr %s208, 16
        %s210 = scalar_lea.vmem [#allocation8], %s209
        %v211 = vld [vmem:[%s180] sm:$0xff]
        %v212 = vld [vmem:[#allocation5] sm:$0x7f]
        %v213 = vld [vmem:[#allocation7] sm:$0x7f]
        %v214 = vlaneseq
        %v215 = vshrl.u32 %v214, 7
        %v216 = vsub.s32 3, %v215
        %v217 = vrot.slane %v212, %v216
        %v218 = vmul.f32 %v217, %v211
        %v219 = vlaneseq
        %v220 = vshrl.u32 %v219, 7
        %v221 = vsub.s32 3, %v220
        %v222 = vrot.slane %v213, %v221
        %v223 = vmul.f32 %v222, %v211
        %224 = vrot.lane.b32.xlu0 %v211, 3
        %v225 = vpop.permute.xlu0 %224
        %v226 = vlaneseq
        %v227 = vshrl.u32 %v226, 7
        %v228 = vsub.s32 0, %v227
        %v229 = vrot.slane %v212, %v228
        %v230 = vmul.f32 %v229, %v225
        %v231 = vadd.f32 %v218, %v230
        %v232 = vlaneseq
        %v233 = vshrl.u32 %v232, 7
        %v234 = vsub.s32 0, %v233
        %v235 = vrot.slane %v213, %v234
        %v236 = vmul.f32 %v235, %v225
        %v237 = vadd.f32 %v223, %v236
        %238 = vrot.lane.b32.xlu0 %v211, 2
        %v239 = vpop.permute.xlu0 %238
        %v240 = vlaneseq
        %v241 = vshrl.u32 %v240, 7
        %v242 = vsub.s32 1, %v241
        %v243 = vrot.slane %v212, %v242
        %v244 = vmul.f32 %v243, %v239
        %v245 = vadd.f32 %v231, %v244
        %v246 = vlaneseq
        %v247 = vshrl.u32 %v246, 7
        %v248 = vsub.s32 1, %v247
        %v249 = vrot.slane %v213, %v248
        %v250 = vmul.f32 %v249, %v239
        %v251 = vadd.f32 %v237, %v250
        %252 = vrot.lane.b32.xlu0 %v211, 1
        %v253 = vpop.permute.xlu0 %252
        %v254 = vlaneseq
        %v255 = vshrl.u32 %v254, 7
        %v256 = vsub.s32 2, %v255
        %v257 = vrot.slane %v212, %v256
        %v258 = vmul.f32 %v257, %v253
        %v259 = vadd.f32 %v245, %v258
        %v260 = vlaneseq
        %v261 = vshrl.u32 %v260, 7
        %v262 = vsub.s32 2, %v261
        %v263 = vrot.slane %v213, %v262
        %v264 = vmul.f32 %v263, %v253
        %v265 = vadd.f32 %v251, %v264
        %266 = vrot.lane.b32.xlu0 %v211, 127
        %v267 = vpop.permute.xlu0 %266
        %v268 = vlaneseq
        %v269 = vshrl.u32 %v268, 7
        %v270 = vsub.s32 4, %v269
        %v271 = vrot.slane %v212, %v270
        %v272 = vmul.f32 %v271, %v267
        %v273 = vadd.f32 %v259, %v272
        %v274 = vlaneseq
        %v275 = vshrl.u32 %v274, 7
        %v276 = vsub.s32 4, %v275
        %v277 = vrot.slane %v213, %v276
        %v278 = vmul.f32 %v277, %v267
        %v279 = vadd.f32 %v265, %v278
        %280 = vrot.lane.b32.xlu0 %v211, 126
        %v281 = vpop.permute.xlu0 %280
        %v282 = vlaneseq
        %v283 = vshrl.u32 %v282, 7
        %v284 = vsub.s32 5, %v283
        %v285 = vrot.slane %v212, %v284
        %v286 = vmul.f32 %v285, %v281
        %v287 = vadd.f32 %v273, %v286
        %v288 = vlaneseq
        %v289 = vshrl.u32 %v288, 7
        %v290 = vsub.s32 5, %v289
        %v291 = vrot.slane %v213, %v290
        %v292 = vmul.f32 %v291, %v281
        %v293 = vadd.f32 %v279, %v292
        %294 = vrot.lane.b32.xlu0 %v211, 125
        %v295 = vpop.permute.xlu0 %294
        %v296 = vlaneseq
        %v297 = vshrl.u32 %v296, 7
        %v298 = vsub.s32 6, %v297
        %v299 = vrot.slane %v212, %v298
        %v300 = vmul.f32 %v299, %v295
        %v301 = vadd.f32 %v287, %v300
        %v302 = vlaneseq
        %v303 = vshrl.u32 %v302, 7
        %v304 = vsub.s32 6, %v303
        %v305 = vrot.slane %v213, %v304
        %v306 = vmul.f32 %v305, %v295
        %v307 = vadd.f32 %v293, %v306
        %v308 = vxor.u32 %v301, 2147483648
        %v309 = vmul.f32 %v308, 1.442695
        %v310 = vpow.pop %v309
        %v311 = vadd.f32 %v310, 1.0
        %v312 = vrcp.pop %v311
        %v313 = vmul.f32 1.0, %v312
        %314 = vst [vmem:[%s210] sm:$0xff] %v313
        %v315 = vxor.u32 %v307, 2147483648
        %v316 = vmul.f32 %v315, 1.442695
        %v317 = vpow.pop %v316
        %v318 = vadd.f32 %v317, 1.0
        %v319 = vrcp.pop %v318
        %v320 = vmul.f32 1.0, %v319
        %321 = vst [vmem:[%s210 + $0x8] sm:$0xff] %v320
        %s322 = sand.u32 %s97, 1
        %s323 = scalar_lea.sflag [#allocation4], %s322
        %s324 = sand.u32 %s97, 1
        %s325 = smul.addr %s324, 16
        %s326 = scalar_lea.vmem [#allocation8], %s325
        // Predicated region
        $region45: #{tpu_custom_call.1} parent=31 // pred_check
          %p327 = pneg %p107
        $region46: #{tpu_custom_call.1} parent=31 // pred_check_branch
          %329 = sbr.rel (%p327) target = $region48
        $region47: #{tpu_custom_call.1} parent=31 // pred_region
          %s331 = ssub.s32 256, 256
          %332 = vsyncadd %s323, %s331
          %s333 = smul.addr %s21, 2
          %s334 = smul.addr %s333, 128
          %s335 = scalar_lea.hbm %s3, %s334
          %s337 = sshll.u32 %s326, 4
          %s338 = int_to_ptr.vmem [resolvable:$true] %s337
          %340 = dma.vmem_to_hbm [thread:$0]  %s338, 256, %s335, %s323
        $region48: #{tpu_custom_call.1} parent=31 // pred_fallthru
          _
      $region32: #{tpu_custom_call.1} parent=5 // pred_fallthru
        _
      %p341 = scmp.le.s32.totalorder 2, %s16
      // Predicated region
      $region49: #{tpu_custom_call.1} parent=5 // pred_check
        %p342 = pneg %p341
      $region50: #{tpu_custom_call.1} parent=5 // pred_check_branch
        %344 = sbr.rel (%p342) target = $region52
      $region51: #{tpu_custom_call.1} parent=5 // pred_region
        %s345 = ssub.s32 %s16, 2
        // Predicated region
        $region53: #{tpu_custom_call.1} parent=51 // pred_check
          %p346 = pneg %p113
        $region54: #{tpu_custom_call.1} parent=51 // pred_check_branch
          %348 = sbr.rel (%p346) target = $region56
        $region55: #{tpu_custom_call.1} parent=51 // pred_region
          %s349 = sand.u32 %s98, 1
          %s350 = scalar_lea.sflag [#allocation4], %s349
          %s351 = sand.u32 %s98, 1
          %s352 = smul.addr %s351, 16
          %s353 = scalar_lea.vmem [#allocation8], %s352
          %354 = dma.done %s350, 256
        $region56: #{tpu_custom_call.1} parent=51 // pred_fallthru
          _
      $region52: #{tpu_custom_call.1} parent=5 // pred_fallthru
        _
    $region6: #{tpu_custom_call.1} parent=1 // loop_footer
      %s20 = sadd.s32 1, %s16
    $region7: #{tpu_custom_call.1} parent=1 // loop_footer_branch
      %15 = sbr.rel target = $region3
    $region8: #{tpu_custom_call.1} parent=1 // loop_exit
      _
    %355 = vsyncpa [#allocation3], 1
    %s356 = scalar_lea.sflag [#allocation3], 1
    %357 = vsyncpa %s356, 1
    %358 = vsyncpa [#allocation6], 1
    %359 = vsyncpa [#allocation4], 1
    %s360 = scalar_lea.sflag [#allocation4], 1
    %361 = vsyncpa %s360, 1

</llo_original>
